<compile_context>
chip_gen: v7x
topology: tpu7x:2x2x1
jax: 0.10.0
libtpu: 0.0.40
codegen_flags: <defaults>
</compile_context>

<pallas_src>
import math

import jax
import jax.numpy as jnp
from jax.experimental import pallas as pl
from jax.experimental.pallas import tpu as pltpu

# Loss hyper-parameters (match the PyTorch module defaults).
OMEGA = 14.0
THETA = 0.5
EPSILON = 1.0
ALPHA = 2.1

LANES = 128

_INV_OMEGA = 1.0 / OMEGA
_LN_T = math.log(THETA / EPSILON)     # ln(theta/eps)
_INV_T = EPSILON / THETA              # 1/(theta/eps)  ->  t^(p-1) = t^p * _INV_T
_INV_EPS = 1.0 / EPSILON


def _device_tuning():
    """Return (num_shards, max_block_rows) for the local TPU generation."""
    kind = ""
    try:
        kind = jax.devices()[0].device_kind.lower()
    except Exception:
        pass
    if "v7" in kind or "7x" in kind:
        return 2, 4096    # 2 TensorCores; 16 MiB of f32 input buffers < 32 MiB scoped
    if "v6" in kind or "6e" in kind:
        return 1, 4096    # single TC, 32 MiB scoped-VMEM default
    return 1, 2048        # v5e / v5p / v4 / unknown: stay inside 16 MiB scoped default


def _sublane_quantum(dtype):
    """Native sublane tile height for a dtype: f32 -> 8, bf16 -> 16, int8 -> 32."""
    itemsize = jnp.dtype(dtype).itemsize
    return max(8, 32 // max(1, itemsize))


def _make_kernel(rows_total, block_rows):
    """Partial-sum kernel over a lane-dense (rows_total, 128) slab."""
    folds = block_rows // 8   # block_rows is always a multiple of 8

    def kernel(pred_ref, tgt_ref, out_ref, acc_ref):
        shard = pl.program_id(0)        # "parallel" axis (v7x TensorCores)
        step = pl.program_id(1)         # "arbitrary" reduction axis
        n_steps = pl.num_programs(1)

        @pl.when(step == 0)
        def _init():
            acc_ref[...] = jnp.zeros_like(acc_ref)

        y = tgt_ref[...].astype(jnp.float32)
        y_hat = pred_ref[...].astype(jnp.float32)
        d = jnp.abs(y - y_hat)
        p = ALPHA - y
        small = d < THETA               # branch-1 selector (|y - y_hat| < theta)

        # One log / exp / log1p per element: select the transcendental
        # arguments per branch instead of computing both branches' results.
        #   branch 1: e = (d/omega)^p      branch 2: e = (theta/eps)^p
        lg = jnp.log(jnp.where(small, d * _INV_OMEGA, 1.0))
        z = jnp.where(small, p * lg, p * _LN_T)
        e = jnp.exp(z)
        log_term = OMEGA * jnp.log1p(e)

        # 1/(1+e): EUP approx reciprocal + one Newton step (~1e-7 rel error).
        denom = 1.0 + e
        r = pl.reciprocal(denom, approx=True)
        r = r * (2.0 - denom * r)

        # A = omega * 1/(1+t^p) * p * t^(p-1) / eps ; loss2 = A*(d-theta)+log_term
        a_coef = (OMEGA * _INV_T * _INV_EPS) * r * p * e
        loss = jnp.where(small, log_term, a_coef * (d - THETA) + log_term)

        def fold(x):
            # (block_rows,128) -> (8,128): tile-aligned reshape + leading-axis
            # sum -> pure VPU adds, no cross-lane work.
            return jnp.sum(x.reshape(folds, 8, LANES), axis=0)

        # Un-clamped logical block index.  Only the boundary block and clamped
        # over-covering shard blocks ever contain invalid rows, so only they
        # pay for the mask (pl.when-gated).
        blk = shard * n_steps + step
        needs_mask = (blk + 1) * block_rows > rows_total

        @pl.when(needs_mask)
        def _masked_accum():
            row_ids = jax.lax.broadcasted_iota(jnp.int32, (block_rows, LANES), 0)
            valid = (blk * block_rows + row_ids) < rows_total
            acc_ref[...] += fold(jnp.where(valid, loss, 0.0))

        @pl.when(jnp.logical_not(needs_mask))
        def _full_accum():
            acc_ref[...] += fold(loss)

        # Lane-dense epilogue: dump the (8,128) partial-sum tile; the wrapper
        # does the final reduce over 8*128*num_shards floats.
        @pl.when(step == n_steps - 1)
        def _finalize():
            out_ref[...] = acc_ref[...]

    return kernel


def _elementwise_loss(pred, target):
    """Per-element Adaptive Wing loss in plain JAX (mirrors the torch math)."""
    y = target.astype(jnp.float32)
    y_hat = pred.astype(jnp.float32)
    d = jnp.abs(y - y_hat)
    p = ALPHA - y
    t = THETA / EPSILON
    tp = jnp.power(t, p)
    l1 = OMEGA * jnp.log1p(jnp.power(d / OMEGA, p))
    A = OMEGA * (1.0 / (1.0 + tp)) * p * jnp.power(t, p - 1.0) * (1.0 / EPSILON)
    C = THETA * A - OMEGA * jnp.log1p(tp)
    l2 = A * d - C
    return jnp.where(d < THETA, l1, l2)


def _reference_loss(pred, target):
    loss = _elementwise_loss(pred, target)
    return jnp.sum(loss) / loss.size


def adaptive_wing_loss(pred, target, *, block_rows=None, num_shards=None):
    """Adaptive Wing loss over same-shaped float arrays (f32 or bf16; bf16
    halves HBM traffic — the kernel upcasts in VMEM).  Returns a scalar f32."""
    assert pred.shape == target.shape, (pred.shape, target.shape)
    n_elems = int(pred.size)
    if n_elems == 0:
        return jnp.float32(0.0)

    pred_flat = jnp.ravel(pred)
    tgt_flat = jnp.ravel(target)

    sub = _sublane_quantum(pred_flat.dtype)
    rows = n_elems // LANES                  # full 128-lane rows
    main_elems = rows * LANES
    max_br = (rows // sub) * sub             # largest legal block height

    dev_shards, dev_max_rows = _device_tuning()
    shards = dev_shards if num_shards is None else max(1, int(num_shards))

    total = jnp.float32(0.0)
    use_kernel = max_br >= sub               # at least one full block available

    if use_kernel:
        if block_rows is None:
            br = min(dev_max_rows, max_br)
        else:
            br = min(max(sub, (int(block_rows) // sub) * sub), max_br)

        main_pred = pred_flat if main_elems == n_elems else pred_flat[:main_elems]
        main_tgt = tgt_flat if main_elems == n_elems else tgt_flat[:main_elems]
        pred2d = main_pred.reshape(rows, LANES)
        tgt2d = main_tgt.reshape(rows, LANES)

        total_blocks = -(-rows // br)
        shards = min(shards, total_blocks)
        blocks_per_shard = -(-total_blocks // shards)

        def in_map(s, i):
            blk = s * blocks_per_shard + i
            # Over-covering shards clamp onto a valid block; their contribution
            # is zeroed by the in-kernel mask (driven by the unclamped index).
            return (jnp.minimum(blk, total_blocks - 1), 0)

        partials = pl.pallas_call(
            _make_kernel(rows, br),
            out_shape=jax.ShapeDtypeStruct((shards * 8, LANES), jnp.float32),
            grid_spec=pltpu.PrefetchScalarGridSpec(
                num_scalar_prefetch=0,
                grid=(shards, blocks_per_shard),
                in_specs=[
                    pl.BlockSpec((br, LANES), in_map),
                    pl.BlockSpec((br, LANES), in_map),
                ],
                out_specs=pl.BlockSpec((8, LANES), lambda s, i: (s, 0)),
                scratch_shapes=[pltpu.VMEM((8, LANES), jnp.float32)],
            ),
            compiler_params=pltpu.CompilerParams(
                dimension_semantics=("parallel", "arbitrary"),
            ),
        )(pred2d, tgt2d)
        total = total + jnp.sum(partials)
    else:
        main_elems = 0   # tiny input: everything goes through the plain-JAX path

    # Ragged tail (< 128 elements in the normal case): plain JAX, no jnp.pad
    # (which would cost a full extra HBM pass over both inputs).
    if main_elems != n_elems:
        total = total + jnp.sum(
            _elementwise_loss(pred_flat[main_elems:], tgt_flat[main_elems:]))

    # Every element falls in exactly one branch, so the torch denominator
    # (len(loss1) + len(loss2)) equals the total element count.
    return total / jnp.float32(n_elems)


if __name__ == "__main__":
    key = jax.random.PRNGKey(0)
    k1, k2, k3, k4 = jax.random.split(key, 4)

    # Case 1: nominal heatmap-shaped input, device-default tuning.
    B, N, H, W = 2, 4, 16, 16
    pred = jax.random.uniform(k1, (B, N, H, W), dtype=jnp.float32)
    target = jax.random.uniform(k2, (B, N, H, W), dtype=jnp.float32)
    out = jax.block_until_ready(adaptive_wing_loss(pred, target))
    ref = _reference_loss(pred, target)
    assert jnp.allclose(out, ref, rtol=1e-4, atol=1e-4), (out, ref)

    # Case 2: multi-step accumulation on a single shard (2 full blocks).
    out_ms = jax.block_until_ready(
        adaptive_wing_loss(pred, target, block_rows=8, num_shards=1))
    assert jnp.allclose(out_ms, ref, rtol=1e-4, atol=1e-4), (out_ms, ref)

    # Case 3: ragged element count + forced 2 shards -> exercises the
    # pl.when-gated mask on the partial boundary block and the plain-JAX tail.
    pred2 = jax.random.uniform(k3, (3, 5, 7, 11), dtype=jnp.float32)
    target2 = jax.random.uniform(k4, (3, 5, 7, 11), dtype=jnp.float32)
    out2 = jax.block_until_ready(
        adaptive_wing_loss(pred2, target2, block_rows=8, num_shards=2))
    ref2 = _reference_loss(pred2, target2)
    assert jnp.allclose(out2, ref2, rtol=1e-4, atol=1e-4), (out2, ref2)

    # Case 4: bf16 inputs (halved HBM traffic; in-kernel upcast path).
    pred_bf = pred.astype(jnp.bfloat16)
    target_bf = target.astype(jnp.bfloat16)
    out_bf = jax.block_until_ready(adaptive_wing_loss(pred_bf, target_bf))
    ref_bf = _reference_loss(pred_bf, target_bf)
    assert jnp.allclose(out_bf, ref_bf, rtol=1e-3, atol=1e-3), (out_bf, ref_bf)

    print("KERNEL_OK")
</pallas_src>

<mosaic_0001>
module attributes {stable_mosaic.version = 11 : i64} {
  func.func @kernel(%arg0: i32, %arg1: i32, %arg2: memref<16x128xf32, #tpu.memory_space<vmem>>, %arg3: memref<16x128xf32, #tpu.memory_space<vmem>>, %arg4: memref<8x128xf32, #tpu.memory_space<vmem>>, %arg5: memref<8x128xf32, #tpu.memory_space<vmem>>) attributes {dimension_semantics = [#tpu.dimension_semantics<parallel>, #tpu.dimension_semantics<arbitrary>], iteration_bounds = array<i64: 1, 1>, scalar_prefetch = 0 : i64, scratch_operands = 1 : i64, tpu.core_type = #tpu.core_type<tc>, window_params = [{transform_indices = @transform_0, window_bounds = array<i64: 16, 128>}, {transform_indices = @transform_1, window_bounds = array<i64: 16, 128>}, {transform_indices = @transform_2, window_bounds = array<i64: 8, 128>}]} {
    %c0_i32 = arith.constant 0 : i32
    %0 = arith.cmpi eq, %arg1, %c0_i32 : i32
    %1 = arith.extui %0 : i1 to i32
    %c0_i32_0 = arith.constant 0 : i32
    %2 = arith.cmpi ne, %1, %c0_i32_0 : i32
    scf.if %2 {
      %cst_19 = arith.constant 0.000000e+00 : f32
      %53 = vector.broadcast %cst_19 : f32 to vector<8x128xf32>
      %c0_20 = arith.constant 0 : index
      %c0_21 = arith.constant 0 : index
      %54 = vector.load %arg5[%c0_20, %c0_21] : memref<8x128xf32, #tpu.memory_space<vmem>>, vector<8x128xf32>
      tpu.vector_store %arg5[%c0_20, %c0_21], %53 {strides = array<i32>} : memref<8x128xf32, #tpu.memory_space<vmem>>, vector<8x128xf32>,
    } else {
    }
    %c0 = arith.constant 0 : index
    %c0_1 = arith.constant 0 : index
    %3 = vector.load %arg3[%c0, %c0_1] : memref<16x128xf32, #tpu.memory_space<vmem>>, vector<16x128xf32>
    %c0_2 = arith.constant 0 : index
    %c0_3 = arith.constant 0 : index
    %4 = vector.load %arg2[%c0_2, %c0_3] : memref<16x128xf32, #tpu.memory_space<vmem>>, vector<16x128xf32>
    %5 = arith.subf %3, %4 : vector<16x128xf32>
    %6 = math.absf %5 : vector<16x128xf32>
    %cst = arith.constant 2.100000e+00 : f32
    %7 = vector.broadcast %cst : f32 to vector<16x128xf32>
    %8 = arith.subf %7, %3 : vector<16x128xf32>
    %cst_4 = arith.constant 5.000000e-01 : f32
    %9 = vector.broadcast %cst_4 : f32 to vector<16x128xf32>
    %10 = arith.cmpf olt, %6, %9 : vector<16x128xf32>
    %cst_5 = arith.constant 0.0714285746 : f32
    %11 = vector.broadcast %cst_5 : f32 to vector<16x128xf32>
    %12 = arith.mulf %6, %11 : vector<16x128xf32>
    %cst_6 = arith.constant 1.000000e+00 : f32
    %13 = vector.broadcast %cst_6 : f32 to vector<16x128xf32>
    %14 = arith.select %10, %12, %13 : vector<16x128xi1>, vector<16x128xf32>
    %15 = math.log %14 : vector<16x128xf32>
    %16 = arith.mulf %8, %15 : vector<16x128xf32>
    %cst_7 = arith.constant -0.693147182 : f32
    %17 = vector.broadcast %cst_7 : f32 to vector<16x128xf32>
    %18 = arith.mulf %8, %17 : vector<16x128xf32>
    %19 = arith.select %10, %16, %18 : vector<16x128xi1>, vector<16x128xf32>
    %20 = math.exp %19 : vector<16x128xf32>
    %21 = math.log1p %20 : vector<16x128xf32>
    %cst_8 = arith.constant 1.400000e+01 : f32
    %22 = vector.broadcast %cst_8 : f32 to vector<16x128xf32>
    %23 = arith.mulf %22, %21 : vector<16x128xf32>
    %cst_9 = arith.constant 1.000000e+00 : f32
    %24 = vector.broadcast %cst_9 : f32 to vector<16x128xf32>
    %25 = arith.addf %24, %20 : vector<16x128xf32>
    %26 = tpu.reciprocal %25 {approx = true} : vector<16x128xf32> -> vector<16x128xf32>
    %27 = arith.mulf %25, %26 : vector<16x128xf32>
    %cst_10 = arith.constant 2.000000e+00 : f32
    %28 = vector.broadcast %cst_10 : f32 to vector<16x128xf32>
    %29 = arith.subf %28, %27 : vector<16x128xf32>
    %30 = arith.mulf %26, %29 : vector<16x128xf32>
    %cst_11 = arith.constant 2.800000e+01 : f32
    %31 = vector.broadcast %cst_11 : f32 to vector<16x128xf32>
    %32 = arith.mulf %31, %30 : vector<16x128xf32>
    %33 = arith.mulf %32, %8 : vector<16x128xf32>
    %34 = arith.mulf %33, %20 : vector<16x128xf32>
    %cst_12 = arith.constant 5.000000e-01 : f32
    %35 = vector.broadcast %cst_12 : f32 to vector<16x128xf32>
    %36 = arith.subf %6, %35 : vector<16x128xf32>
    %37 = arith.mulf %34, %36 : vector<16x128xf32>
    %38 = arith.addf %37, %23 : vector<16x128xf32>
    %39 = arith.select %10, %23, %38 : vector<16x128xi1>, vector<16x128xf32>
    %c1_i32 = arith.constant 1 : i32
    %40 = arith.muli %arg0, %c1_i32 : i32
    %41 = arith.addi %40, %arg1 : i32
    %c1_i32_13 = arith.constant 1 : i32
    %42 = arith.addi %41, %c1_i32_13 : i32
    %c16_i32 = arith.constant 16 : i32
    %43 = arith.muli %42, %c16_i32 : i32
    %c16_i32_14 = arith.constant 16 : i32
    %44 = arith.cmpi sgt, %43, %c16_i32_14 : i32
    %45 = arith.extui %44 : i1 to i32
    %c0_i32_15 = arith.constant 0 : i32
    %46 = arith.cmpi ne, %45, %c0_i32_15 : i32
    scf.if %46 {
      %53 = tpu.iota {dimensions = array<i32: 0>} : vector<16x128xi32>
      %c16_i32_19 = arith.constant 16 : i32
      %54 = arith.muli %41, %c16_i32_19 : i32
      %55 = vector.broadcast %54 : i32 to vector<16x128xi32>
      %56 = arith.addi %55, %53 : vector<16x128xi32>
      %c16_i32_20 = arith.constant 16 : i32
      %57 = vector.broadcast %c16_i32_20 : i32 to vector<16x128xi32>
      %58 = arith.cmpi slt, %56, %57 : vector<16x128xi32>
      %c0_21 = arith.constant 0 : index
      %c0_22 = arith.constant 0 : index
      %59 = vector.load %arg5[%c0_21, %c0_22] : memref<8x128xf32, #tpu.memory_space<vmem>>, vector<8x128xf32>
      %cst_23 = arith.constant 0.000000e+00 : f32
      %60 = vector.broadcast %cst_23 : f32 to vector<16x128xf32>
      %61 = arith.select %58, %39, %60 : vector<16x128xi1>, vector<16x128xf32>
      %62 = vector.shape_cast %61 : vector<16x128xf32> to vector<2x8x128xf32>
      %cst_24 = arith.constant dense<0.000000e+00> : vector<8x128xf32>
      %63 = vector.multi_reduction <add>, %62, %cst_24 [0] : vector<2x8x128xf32> to vector<8x128xf32>
      %64 = arith.addf %59, %63 : vector<8x128xf32>
      %c0_25 = arith.constant 0 : index
      %c0_26 = arith.constant 0 : index
      %65 = vector.load %arg5[%c0_25, %c0_26] : memref<8x128xf32, #tpu.memory_space<vmem>>, vector<8x128xf32>
      tpu.vector_store %arg5[%c0_25, %c0_26], %64 {strides = array<i32>} : memref<8x128xf32, #tpu.memory_space<vmem>>, vector<8x128xf32>,
    } else {
    }
    %true = arith.constant true
    %47 = arith.xori %44, %true : i1
    %48 = arith.extui %47 : i1 to i32
    %c0_i32_16 = arith.constant 0 : i32
    %49 = arith.cmpi ne, %48, %c0_i32_16 : i32
    scf.if %49 {
      %c0_19 = arith.constant 0 : index
      %c0_20 = arith.constant 0 : index
      %53 = vector.load %arg5[%c0_19, %c0_20] : memref<8x128xf32, #tpu.memory_space<vmem>>, vector<8x128xf32>
      %54 = vector.shape_cast %39 : vector<16x128xf32> to vector<2x8x128xf32>
      %cst_21 = arith.constant dense<0.000000e+00> : vector<8x128xf32>
      %55 = vector.multi_reduction <add>, %54, %cst_21 [0] : vector<2x8x128xf32> to vector<8x128xf32>
      %56 = arith.addf %53, %55 : vector<8x128xf32>
      %c0_22 = arith.constant 0 : index
      %c0_23 = arith.constant 0 : index
      %57 = vector.load %arg5[%c0_22, %c0_23] : memref<8x128xf32, #tpu.memory_space<vmem>>, vector<8x128xf32>
      tpu.vector_store %arg5[%c0_22, %c0_23], %56 {strides = array<i32>} : memref<8x128xf32, #tpu.memory_space<vmem>>, vector<8x128xf32>,
    } else {
    }
    %c0_i32_17 = arith.constant 0 : i32
    %50 = arith.cmpi eq, %arg1, %c0_i32_17 : i32
    %51 = arith.extui %50 : i1 to i32
    %c0_i32_18 = arith.constant 0 : i32
    %52 = arith.cmpi ne, %51, %c0_i32_18 : i32
    scf.if %52 {
      %c0_19 = arith.constant 0 : index
      %c0_20 = arith.constant 0 : index
      %53 = vector.load %arg5[%c0_19, %c0_20] : memref<8x128xf32, #tpu.memory_space<vmem>>, vector<8x128xf32>
      %c0_21 = arith.constant 0 : index
      %c0_22 = arith.constant 0 : index
      %54 = vector.load %arg4[%c0_21, %c0_22] : memref<8x128xf32, #tpu.memory_space<vmem>>, vector<8x128xf32>
      tpu.vector_store %arg4[%c0_21, %c0_22], %53 {strides = array<i32>} : memref<8x128xf32, #tpu.memory_space<vmem>>, vector<8x128xf32>,
    } else {
    }
    return
  }
  func.func @transform_0(%arg0: i32, %arg1: i32) -> (i32, i32) {
    %c1_i32 = arith.constant 1 : i32
    %0 = arith.muli %arg0, %c1_i32 : i32
    %1 = arith.addi %0, %arg1 : i32
    %c0_i32 = arith.constant 0 : i32
    %2 = arith.minsi %1, %c0_i32 : i32
    %c0_i32_0 = arith.constant 0 : i32
    %c0_i32_1 = arith.constant 0 : i32
    return %2, %c0_i32_0 : i32, i32
  }
  func.func @transform_1(%arg0: i32, %arg1: i32) -> (i32, i32) {
    %c1_i32 = arith.constant 1 : i32
    %0 = arith.muli %arg0, %c1_i32 : i32
    %1 = arith.addi %0, %arg1 : i32
    %c0_i32 = arith.constant 0 : i32
    %2 = arith.minsi %1, %c0_i32 : i32
    %c0_i32_0 = arith.constant 0 : i32
    %c0_i32_1 = arith.constant 0 : i32
    return %2, %c0_i32_0 : i32, i32
  }
  func.func @transform_2(%arg0: i32, %arg1: i32) -> (i32, i32) {
    %c0_i32 = arith.constant 0 : i32
    %c0_i32_0 = arith.constant 0 : i32
    return %arg0, %c0_i32 : i32, i32
  }
}

</mosaic_0001>

<llo_original>
// kernel: tpu_custom_call.1
$region0: #{tpu_custom_call.1}
  #allocation0 [shape = 'u32[]', space=smem, size = 0x4, offset = 0x4, fixed_abs, tag = 'smem constant byte address 0x4 - core index']
  #allocation1 [shape = 'u32[144,128]{1,0:T(1,128)}', space=vmem, size = 0x12000, scoped, tag = 'internal scratch']
  #allocation2 [shape = 'f32[8,128]{1,0:T(8,128)}', space=vmem, size = 0x1000, scoped, tag = 'scratch operand']
  %s0 = inlined_call_operand.hbm [shape: f32[16,128], index: 0, kind: input, shape index: {}]
  %s1 = inlined_call_operand.hbm [shape: f32[16,128], index: 1, kind: input, shape index: {}]
  %s2 = inlined_call_operand.hbm [shape: f32[8,128], index: 2, kind: output, shape index: {}]
  %s3 = sld [smem:[#allocation0]]
  $region42: #{tpu_custom_call.1} parent=0
    _
  %s5 = ssub.s32 1, %s3
  %s6 = scalar_select 0, %s5, %s3
  $region1: #{tpu_custom_call.1} parent=0
    #allocation3 [shape = 'u8[8192]{0}', space=vmem, size = 0x2000, scoped, tag = 'input window, operand 0, single buffered']
    #allocation4 [shape = 's32[1]{0}', space=sflag, size = 0x4, scoped, tag = 'scoped memory for tpu_custom_call.1']
    #allocation5 [shape = 's32[1]{0}', space=sflag, size = 0x4, scoped, tag = 'scoped memory for tpu_custom_call.1']
    #allocation6 [shape = 'u8[8192]{0}', space=vmem, size = 0x2000, scoped, tag = 'input window, operand 1, single buffered']
    #allocation7 [shape = 's32[1]{0}', space=sflag, size = 0x4, scoped, tag = 'scoped memory for tpu_custom_call.1']
    #allocation8 [shape = 'u8[4096]{0}', space=vmem, size = 0x1000, scoped, tag = 'output window, operand 0, single buffered']
    %7 = vsyncpa [#allocation4], 0
    %8 = vsyncpa [#allocation7], 0
    %9 = vsyncpa [#allocation5], 0
    // Predicated region
    $region2: #{tpu_custom_call.1} parent=1 // pred_check
      _
    $region3: #{tpu_custom_call.1} parent=1 // pred_check_branch
      %11 = sbr.rel (0) target = $region5
    $region4: #{tpu_custom_call.1} parent=1 // pred_region
      %s12 = sadd.s32 0, 0
      %p13 = scmp.lt.s32.totalorder %s12, 0
      %s14 = scalar_select %p13, %s12, 0
      %s15 = smul.u32 2, %s14
      %s17 = ssub.s32 256, 256
      %18 = vsyncadd [#allocation4], %s17
      %s19 = smul.addr %s15, 128
      %s20 = scalar_lea.hbm %s0, %s19
      %s21 = sshll.u32 [#allocation3], 4
      %s22 = int_to_ptr.vmem [resolvable:$true] %s21
      %27 = dma.hbm_to_vmem [thread:$0]  %s20, 256, %s22, [#allocation4], 128, 128, 8
    $region5: #{tpu_custom_call.1} parent=1 // pred_fallthru
      _
    // Predicated region
    $region6: #{tpu_custom_call.1} parent=1 // pred_check
      _
    $region7: #{tpu_custom_call.1} parent=1 // pred_check_branch
      %29 = sbr.rel (0) target = $region9
    $region8: #{tpu_custom_call.1} parent=1 // pred_region
      %s30 = sadd.s32 0, 0
      %p31 = scmp.lt.s32.totalorder %s30, 0
      %s32 = scalar_select %p31, %s30, 0
      %s33 = smul.u32 2, %s32
      %s35 = ssub.s32 256, 256
      %36 = vsyncadd [#allocation7], %s35
      %s37 = smul.addr %s33, 128
      %s38 = scalar_lea.hbm %s1, %s37
      %s39 = sshll.u32 [#allocation6], 4
      %s40 = int_to_ptr.vmem [resolvable:$true] %s39
      %45 = dma.hbm_to_vmem [thread:$0]  %s38, 256, %s40, [#allocation7], 128, 128, 8
    $region9: #{tpu_custom_call.1} parent=1 // pred_fallthru
      _
    // Predicated region
    $region10: #{tpu_custom_call.1} parent=1 // pred_check
      _
    $region11: #{tpu_custom_call.1} parent=1 // pred_check_branch
      %47 = sbr.rel (0) target = $region13
    $region12: #{tpu_custom_call.1} parent=1 // pred_region
      %48 = dma.done [#allocation4], 256
    $region13: #{tpu_custom_call.1} parent=1 // pred_fallthru
      _
    // Predicated region
    $region14: #{tpu_custom_call.1} parent=1 // pred_check
      _
    $region15: #{tpu_custom_call.1} parent=1 // pred_check_branch
      %50 = sbr.rel (0) target = $region17
    $region16: #{tpu_custom_call.1} parent=1 // pred_region
      %51 = dma.done [#allocation7], 256
    $region17: #{tpu_custom_call.1} parent=1 // pred_fallthru
      _
    %s52 = sadd.s32 0, 0
    %p53 = scmp.lt.s32.totalorder %s52, 0
    %s54 = scalar_select %p53, %s52, 0
    %s55 = smul.u32 2, %s54
    %s56 = sadd.s32 0, 0
    %p57 = scmp.lt.s32.totalorder %s56, 0
    %s58 = scalar_select %p57, %s56, 0
    %s59 = smul.u32 2, %s58
    %p60 = scmp.eq.s32.totalorder 0, 0
    // Predicated region
    $region18: #{tpu_custom_call.1} parent=1 // pred_check
      %p61 = pneg %p60
    $region19: #{tpu_custom_call.1} parent=1 // pred_check_branch
      %63 = sbr.rel (%p61) target = $region21
    $region20: #{tpu_custom_call.1} parent=1 // pred_region
      %64 = vst [vmem:[#allocation2] sm:$0xff] 0.0
    $region21: #{tpu_custom_call.1} parent=1 // pred_fallthru
      _
    %v65 = vld [vmem:[#allocation6] sm:$0xff]
    %v66 = vld [vmem:[#allocation6 + $0x8] sm:$0xff]
    %v67 = vld [vmem:[#allocation3] sm:$0xff]
    %v68 = vld [vmem:[#allocation3 + $0x8] sm:$0xff]
    %v69 = vsub.f32 %v65, %v67
    %v70 = vsub.f32 %v66, %v68
    %v71 = vand.u32 2147483647, %v69
    %v72 = vand.u32 2147483647, %v70
    %v73 = vsub.f32 2.1, %v65
    %v74 = vsub.f32 2.1, %v66
    %vm75 = vcmp.lt.f32.partialorder %v71, 0.5
    %vm76 = vcmp.lt.f32.partialorder %v72, 0.5
    %v77 = vmul.f32 %v71, 0.071428575
    %v78 = vmul.f32 %v72, 0.071428575
    %v79 = vsel %vm75, %v77, 1.0
    %v80 = vsel %vm76, %v78, 1.0
    %v81 = vlog2.pop %v79
    %v82 = vmul.f32 %v81, 0.6931472
    %v83 = vlog2.pop %v80
    %v84 = vmul.f32 %v83, 0.6931472
    %v85 = vmul.f32 %v73, %v82
    %v86 = vmul.f32 %v74, %v84
    %v87 = vmul.f32 %v73, -0.6931472
    %v88 = vmul.f32 %v74, -0.6931472
    %v89 = vsel %vm75, %v85, %v87
    %v90 = vsel %vm76, %v86, %v88
    %v91 = vmul.f32 %v89, 1.442695
    %v92 = vpow.pop %v91
    %v93 = vmul.f32 %v90, 1.442695
    %v94 = vpow.pop %v93
    %v95 = vadd.f32 %v92, 1.0
    %v96 = vlog2.pop %v95
    %v97 = vmul.f32 %v96, 0.6931472
    %v98 = vmul.f32 -0.5, %v92
    %v99 = vadd.f32 %v98, 1.0
    %v100 = vmul.f32 %v99, %v92
    %v101 = vand.u32 2147483647, %v92
    %vm102 = vcmp.lt.f32.partialorder %v101, 0.0004427343
    %v103 = vsel %vm102, %v100, %v97
    %v104 = vadd.f32 %v94, 1.0
    %v105 = vlog2.pop %v104
    %v106 = vmul.f32 %v105, 0.6931472
    %v107 = vmul.f32 -0.5, %v94
    %v108 = vadd.f32 %v107, 1.0
    %v109 = vmul.f32 %v108, %v94
    %v110 = vand.u32 2147483647, %v94
    %vm111 = vcmp.lt.f32.partialorder %v110, 0.0004427343
    %v112 = vsel %vm111, %v109, %v106
    %v113 = vmul.f32 %v103, 14.0
    %v114 = vmul.f32 %v112, 14.0
    %v115 = vadd.f32 %v92, 1.0
    %v116 = vadd.f32 %v94, 1.0
    %v117 = vrcp.pop %v115
    %v118 = vrcp.pop %v116
    %v119 = vmul.f32 %v115, %v117
    %v120 = vmul.f32 %v116, %v118
    %v121 = vsub.f32 2.0, %v119
    %v122 = vsub.f32 2.0, %v120
    %v123 = vmul.f32 %v117, %v121
    %v124 = vmul.f32 %v118, %v122
    %v125 = vmul.f32 %v123, 28.0
    %v126 = vmul.f32 %v124, 28.0
    %v127 = vmul.f32 %v125, %v73
    %v128 = vmul.f32 %v126, %v74
    %v129 = vmul.f32 %v127, %v92
    %v130 = vmul.f32 %v128, %v94
    %v131 = vsub.f32 %v71, 0.5
    %v132 = vsub.f32 %v72, 0.5
    %v133 = vmul.f32 %v129, %v131
    %v134 = vmul.f32 %v130, %v132
    %v135 = vadd.f32 %v133, %v113
    %v136 = vadd.f32 %v134, %v114
    %v137 = vsel %vm75, %v113, %v135
    %v138 = vsel %vm76, %v114, %v136
    %s139 = sadd.s32 0, 0
    %s140 = sadd.s32 %s139, 1
    %s141 = smul.u32 %s140, 16
    %p142 = scmp.gt.s32.totalorder %s141, 16
    // Predicated region
    $region22: #{tpu_custom_call.1} parent=1 // pred_check
      %p143 = pneg %p142
    $region23: #{tpu_custom_call.1} parent=1 // pred_check_branch
      %145 = sbr.rel (%p143) target = $region25
    $region24: #{tpu_custom_call.1} parent=1 // pred_region
      %v146 = vlaneseq
      %v147 = vshrl.u32 %v146, 7
      %v148 = vadd.s32 %v147, 8
      %s149 = smul.u32 %s139, 16
      %v150 = vstv %s149
      %v151 = vadd.s32 %v150, %v147
      %v152 = vadd.s32 %v150, %v148
      %vm153 = vcmp.lt.s32.totalorder %v151, 16
      %vm154 = vcmp.lt.s32.totalorder %v152, 16
      %v155 = vld [vmem:[#allocation2] sm:$0xff]
      %v156 = vsel %vm153, %v137, 0.0
      %v157 = vsel %vm154, %v138, 0.0
      %v158 = vadd.f32 %v156, %v157
      %v159 = vadd.f32 %v155, %v158
      %160 = vst [vmem:[#allocation2] sm:$0xff] %v159
    $region25: #{tpu_custom_call.1} parent=1 // pred_fallthru
      _
    %p161 = scmp.le.s32.totalorder %s141, 16
    // Predicated region
    $region26: #{tpu_custom_call.1} parent=1 // pred_check
      %p162 = pneg %p161
    $region27: #{tpu_custom_call.1} parent=1 // pred_check_branch
      %164 = sbr.rel (%p162) target = $region29
    $region28: #{tpu_custom_call.1} parent=1 // pred_region
      %v165 = vld [vmem:[#allocation2] sm:$0xff]
      %v166 = vadd.f32 %v137, %v138
      %v167 = vadd.f32 %v165, %v166
      %168 = vst [vmem:[#allocation2] sm:$0xff] %v167
    $region29: #{tpu_custom_call.1} parent=1 // pred_fallthru
      _
    // Predicated region
    $region30: #{tpu_custom_call.1} parent=1 // pred_check
      %p169 = pneg %p60
    $region31: #{tpu_custom_call.1} parent=1 // pred_check_branch
      %171 = sbr.rel (%p169) target = $region33
    $region32: #{tpu_custom_call.1} parent=1 // pred_region
      %v172 = vld [vmem:[#allocation2] sm:$0xff]
      %173 = vst [vmem:[#allocation8] sm:$0xff] %v172
    $region33: #{tpu_custom_call.1} parent=1 // pred_fallthru
      _
    // Predicated region
    $region34: #{tpu_custom_call.1} parent=1 // pred_check
      _
    $region35: #{tpu_custom_call.1} parent=1 // pred_check_branch
      %175 = sbr.rel (0) target = $region37
    $region36: #{tpu_custom_call.1} parent=1 // pred_region
      %s177 = ssub.s32 128, 128
      %178 = vsyncadd [#allocation5], %s177
      %s180 = sshll.u32 [#allocation8], 4
      %s181 = int_to_ptr.vmem [resolvable:$true] %s180
      %183 = dma.vmem_to_hbm [thread:$0]  %s181, 128, %s2, [#allocation5]
    $region37: #{tpu_custom_call.1} parent=1 // pred_fallthru
      _
    // Predicated region
    $region38: #{tpu_custom_call.1} parent=1 // pred_check
      _
    $region39: #{tpu_custom_call.1} parent=1 // pred_check_branch
      %185 = sbr.rel (0) target = $region41
    $region40: #{tpu_custom_call.1} parent=1 // pred_region
      %186 = dma.done [#allocation5], 128
    $region41: #{tpu_custom_call.1} parent=1 // pred_fallthru
      _
    %187 = vsyncpa [#allocation4], 1
    %188 = vsyncpa [#allocation7], 1
    %189 = vsyncpa [#allocation5], 1

</llo_original>
